<compile_context>
chip_gen: v7x
topology: tpu7x:2x2x1
jax: 0.10.0
libtpu: 0.0.40
codegen_flags: <defaults>
</compile_context>

<pallas_src>
import functools

import jax
import jax.numpy as jnp
from jax.experimental import pallas as pl
from jax.experimental.pallas import tpu as pltpu

SCALE = 2                 # F.interpolate(scale_factor=2, mode='nearest')
_LANES = 128
_TARGET_OUT_LANES = 256   # >= 2 full vregs -> unmasked stores, dense tiles


def _cdiv(a, b):
    return -(-a // b)


def _rup(v, m):
    return _cdiv(v, m) * m


def _upsample_kernel(r_ref, x_ref, o_ref, *, precision):
    """One MXU matmul against a one-hot replication matrix.

    r_ref: (K, RN)   one-hot; VMEM-resident across the whole grid.
    x_ref: (tm, K)   rows of the flattened input.
    o_ref: (tm, ON)  packed output rows. If RN == ON, R bakes both row and
           column replication (single full store); else RN == ON // 2 and row
           replication is done with two half-width stores (no concat).
    """
    y = jnp.dot(x_ref[...], r_ref[...],
                preferred_element_type=jnp.float32, precision=precision)
    y = y.astype(o_ref.dtype)
    ow = r_ref.shape[1]
    if ow == o_ref.shape[1]:
        o_ref[...] = y
    else:
        o_ref[:, :ow] = y
        o_ref[:, ow:] = y


def _choose_row_tiling(M, sub, max_tm):
    """Pick (tm, grid) for tiling M independent rows.

    tm is a multiple of `sub` (sublane count), tm <= max_tm where possible,
    grid * tm >= M.  Minimizes the busier-TensorCore row count (v7x megacore
    splits a 'parallel' grid across its 2 TCs), preferring >= 4 steps, then
    fewer steps / less padding.
    """
    max_steps = max(1, M // sub)
    want = min(4, max_steps)
    best = None
    for g in range(1, min(max_steps, 16) + 1):
        tm = _rup(_cdiv(M, g), sub)
        if tm > max_tm:
            continue
        wall = _cdiv(g, 2) * tm          # rows processed by the busier core
        score = (wall, g < want, g)
        if best is None or score < best[0]:
            best = (score, tm, g)
    if best is not None:
        return best[1], best[2]
    # VMEM-limited: largest fitting block; nudge to an even step count.
    tm = max(sub, (max_tm // sub) * sub)
    g = _cdiv(M, tm)
    if g % 2 == 1 and g > 1:
        g += 1
        tm = max(sub, _rup(_cdiv(M, g), sub))
        g = max(g, _cdiv(M, tm))
    return tm, g


def upsample_nearest_2x(x):
    """x: (N, C, H, W) -> (N, C, 2H, 2W); F.interpolate(mode='nearest', scale=2).

    align_corners is ignored for nearest (matches PyTorch)."""
    # TODO(synk): only mode='nearest' with scale_factor=2 (what the test module
    # uses) is implemented; size=/bilinear/... interpolate paths are not.
    N, C, H, W = x.shape
    if not jnp.issubdtype(x.dtype, jnp.floating):
        # TODO(synk): integer/bool inputs have no exact MXU path; plain
        # replication fallback (still trivially mem-bound).
        return jnp.repeat(jnp.repeat(x, SCALE, axis=2), SCALE, axis=3)

    B = N * C
    itemsize = jnp.dtype(x.dtype).itemsize
    sub = {4: 8, 2: 16, 1: 32}.get(itemsize, 8)   # sublane count for dtype

    # ---- fold G consecutive rows into the lane axis -------------------------
    # Grow G (power-of-two divisor of H) until the packed output row is at
    # least _TARGET_OUT_LANES wide; K = G*W stays <= ~128 so the one-hot
    # matmul remains far below the HBM roofline on every chip.
    G = 1
    while SCALE * SCALE * G * W < _TARGET_OUT_LANES and H % (2 * G) == 0:
        G *= 2
    Hb = H // G
    K = G * W
    ON = SCALE * SCALE * K                 # packed output row width (4*G*W)
    use_full_r = G > 1                     # bake row replication into R?
    RN = ON if use_full_r else SCALE * W

    # ---- one-hot replication matrix R, built once (hoisted out of kernel) ---
    j = jnp.arange(RN, dtype=jnp.int32)
    if use_full_r:
        # j = g*(4W) + r*(2W) + w'  ->  source lane = g*W + w'//2  (r folded in)
        src = (j // (SCALE * SCALE * W)) * W + (j % (SCALE * W)) // SCALE
    else:
        # j = w' in [0, 2W)          ->  source lane = w'//2
        src = j // SCALE
    R = (jnp.arange(K, dtype=jnp.int32)[:, None] == src[None, :]).astype(x.dtype)

    # ---- flatten: whole op becomes (B*Hb, K) @ R, tiled over rows only ------
    M = B * Hb
    X2 = x.reshape(M, K)                   # contiguous regroup of (N, C, H, W)

    # ---- padding-aware VMEM budget -------------------------------------------
    row_bytes = (_rup(K, _LANES) + _rup(ON, _LANES)) * itemsize   # x+out per row
    r_bytes = 2 * _rup(K, sub) * _rup(RN, _LANES) * itemsize      # R, 2 buffers
    # TODO(synk): for very large W (>= ~1024) R's two buffers get big; it could
    # be generated once into VMEM scratch instead of shipped as an input.
    try:
        cap = int(getattr(pltpu.get_tpu_info(), "vmem_capacity_bytes", 0))
    except Exception:
        cap = 0
    if cap < (32 << 20):
        cap = 64 << 20                     # v7x-safe fallback
    budget = max(16 << 20, min((3 * cap) // 4, cap - (16 << 20)))
    avail = max(budget - r_bytes, 2 * row_bytes * sub)
    max_tm = max(sub, (avail // (2 * row_bytes)) // sub * sub)    # 2x dbuf

    tm, grid_m = _choose_row_tiling(M, sub, max_tm)
    Mp = tm * grid_m
    if Mp != M:
        X2 = jnp.pad(X2, ((0, Mp - M), (0, 0)))

    actual = 2 * tm * row_bytes + r_bytes
    vmem_limit = int(min(cap, max(32 << 20, actual + (4 << 20))))

    # Exact one-hot gather: full f32 precision for f32 inputs; bf16 MXU with
    # f32 accumulation is already exact for one-hot weights.
    precision = (jax.lax.Precision.HIGHEST if itemsize == 4
                 else jax.lax.Precision.DEFAULT)

    out = pl.pallas_call(
        functools.partial(_upsample_kernel, precision=precision),
        out_shape=jax.ShapeDtypeStruct((Mp, ON), x.dtype),
        grid_spec=pltpu.PrefetchScalarGridSpec(
            num_scalar_prefetch=0,
            grid=(grid_m,),
            in_specs=[
                pl.BlockSpec((K, RN), lambda i: (0, 0)),    # R: VMEM-resident
                pl.BlockSpec((tm, K), lambda i: (i, 0)),    # input row block
            ],
            out_specs=pl.BlockSpec((tm, ON), lambda i: (i, 0)),
        ),
        compiler_params=pltpu.CompilerParams(
            dimension_semantics=("parallel",),  # rows split across v7x's 2 TCs
            vmem_limit_bytes=vmem_limit,
        ),
    )(R, X2)

    out = out[:M]
    # (B*H/G, G*2*2W) is byte-identical to (N, C, 2H, 2W): the packed last dim
    # is ordered [g, r, w'], so output row 2h+r lands contiguously.  The
    # reshape below is pure metadata (no transpose, same HBM bytes).
    return out.reshape(N, C, SCALE * H, SCALE * W)


if __name__ == "__main__":
    key = jax.random.PRNGKey(0)
    x = jax.random.normal(key, (2, 4, 16, 16), dtype=jnp.float32)

    y = jax.block_until_ready(upsample_nearest_2x(x))

    # Pure-JAX reference of F.interpolate(mode='nearest', scale_factor=2).
    ref = jnp.repeat(jnp.repeat(x, SCALE, axis=2), SCALE, axis=3)

    assert y.shape == (2, 4, 32, 32), y.shape
    assert y.dtype == x.dtype, y.dtype
    assert jnp.allclose(y, ref), "mismatch vs nearest-neighbor reference"
    print("KERNEL_OK")
</pallas_src>

<mosaic_0001>
module attributes {stable_mosaic.version = 11 : i64} {
  func.func @_upsample_kernel(%arg0: i32, %arg1: memref<64x256xf32, #tpu.memory_space<vmem>>, %arg2: memref<8x64xf32, #tpu.memory_space<vmem>>, %arg3: memref<8x256xf32, #tpu.memory_space<vmem>>) attributes {dimension_semantics = [#tpu.dimension_semantics<parallel>], iteration_bounds = array<i64: 4>, scalar_prefetch = 0 : i64, scratch_operands = 0 : i64, tpu.core_type = #tpu.core_type<tc>, window_params = [{pipeline_mode = #tpu.pipeline_mode<synchronous>, transform_indices = @transform_0, window_bounds = array<i64: 64, 256>}, {transform_indices = @transform_1, window_bounds = array<i64: 8, 64>}, {transform_indices = @transform_2, window_bounds = array<i64: 8, 256>}]} {
    %c0 = arith.constant 0 : index
    %c0_0 = arith.constant 0 : index
    %0 = vector.load %arg2[%c0, %c0_0] : memref<8x64xf32, #tpu.memory_space<vmem>>, vector<8x64xf32>
    %c0_1 = arith.constant 0 : index
    %c0_2 = arith.constant 0 : index
    %1 = vector.load %arg1[%c0_1, %c0_2] : memref<64x256xf32, #tpu.memory_space<vmem>>, vector<64x256xf32>
    %cst = arith.constant dense<0.000000e+00> : vector<8x256xf32>
    %2 = tpu.matmul %0, %1, %cst {dimension_numbers = #tpu.dot_dimension_numbers<[1], [0], [0], [1], [0, 0, 1, 1], [], []>, precision = #tpu.contract_precision<fp32>} : vector<8x64xf32>, vector<64x256xf32>, vector<8x256xf32> -> vector<8x256xf32>
    %c0_3 = arith.constant 0 : index
    %c0_4 = arith.constant 0 : index
    %3 = vector.load %arg3[%c0_3, %c0_4] : memref<8x256xf32, #tpu.memory_space<vmem>>, vector<8x256xf32>
    tpu.vector_store %arg3[%c0_3, %c0_4], %2 {strides = array<i32>} : memref<8x256xf32, #tpu.memory_space<vmem>>, vector<8x256xf32>,
    return
  }
  func.func @transform_0(%arg0: i32) -> (i32, i32) {
    %c0_i32 = arith.constant 0 : i32
    %c0_i32_0 = arith.constant 0 : i32
    %c0_i32_1 = arith.constant 0 : i32
    return %c0_i32, %c0_i32_0 : i32, i32
  }
  func.func @transform_1(%arg0: i32) -> (i32, i32) {
    %c0_i32 = arith.constant 0 : i32
    %c0_i32_0 = arith.constant 0 : i32
    return %arg0, %c0_i32 : i32, i32
  }
  func.func @transform_2(%arg0: i32) -> (i32, i32) {
    %c0_i32 = arith.constant 0 : i32
    %c0_i32_0 = arith.constant 0 : i32
    return %arg0, %c0_i32 : i32, i32
  }
}

</mosaic_0001>

<llo_original>
// kernel: tpu_custom_call.1
$region0: #{tpu_custom_call.1}
  #allocation0 [shape = 'u32[]', space=smem, size = 0x4, offset = 0x4, fixed_abs, tag = 'smem constant byte address 0x4 - core index']
  #allocation1 [shape = 'u32[144,128]{1,0:T(1,128)}', space=vmem, size = 0x12000, scoped, tag = 'internal scratch']
  %s0 = inlined_call_operand.hbm [shape: f32[64,256], index: 0, kind: input, shape index: {}]
  %s1 = inlined_call_operand.hbm [shape: f32[32,64], index: 1, kind: input, shape index: {}]
  %s2 = inlined_call_operand.hbm [shape: f32[32,256], index: 2, kind: output, shape index: {}]
  %s3 = sld [smem:[#allocation0]]
  $region49: #{tpu_custom_call.1} parent=0
    _
  %s5 = ssub.s32 1, %s3
  %s6 = scalar_select 0, %s5, %s3
  $region1: #{tpu_custom_call.1} parent=0
    #allocation2 [shape = 'u8[65536]{0}', space=vmem, size = 0x10000, scoped, tag = 'input window, operand 0, single buffered']
    #allocation3 [shape = 's32[2]{0}', space=sflag, size = 0x8, scoped, tag = 'scoped memory for tpu_custom_call.1']
    #allocation4 [shape = 's32[2]{0}', space=sflag, size = 0x8, scoped, tag = 'scoped memory for tpu_custom_call.1']
    #allocation5 [shape = 'u8[8192]{0}', space=vmem, size = 0x2000, scoped, tag = 'input window, operand 1']
    #allocation6 [shape = 's32[2]{0}', space=sflag, size = 0x8, scoped, tag = 'scoped memory for tpu_custom_call.1']
    #allocation7 [shape = 'u8[16384]{0}', space=vmem, size = 0x4000, scoped, tag = 'output window, operand 0']
    %7 = vsyncpa [#allocation3], 0
    %8 = vsyncpa [#allocation6], 0
    %s9 = scalar_lea.sflag [#allocation6], 1
    %10 = vsyncpa %s9, 0
    %11 = vsyncpa [#allocation4], 0
    %s12 = scalar_lea.sflag [#allocation4], 1
    %13 = vsyncpa %s12, 0
    loop: start=0, step=1, limit=6
    $region2: #{tpu_custom_call.1} parent=1 // loop_pre_header
      _
    $region3: #{tpu_custom_call.1} parent=1 // loop_header
      %s15 = sphi 0, %s19
      %p16 = scmp.ge.s32.totalorder %s15, 6
      %s23 = sphi 0, %s23
      %s25 = sphi 0, %s23
      %s26 = sphi 0, %s25
      %s40 = sphi 0, %s26
      %s46 = sphi 0, %s48
      %s49 = sphi 0, %s46
      %s50 = sphi 0, %s49
      %s66 = sphi 0, %s50
      %s72 = sphi 0, %s74
      %s75 = sphi 0, %s72
      %s76 = sphi 0, %s75
      %s92 = sphi 0, %s76
    $region4: #{tpu_custom_call.1} parent=1 // loop_header_branch
      %18 = sbr.rel (%p16) target = $region8
    $region5: #{tpu_custom_call.1} parent=1 // loop_body
      %s20 = ssub.s32 %s15, 1
      %s21 = ssub.s32 %s15, 2
      %s22 = sadd.s32 %s15, 1
      %s24 = sadd.s32 %s23, 1
      %p27 = scmp.eq.s32.totalorder %s15, 3
      %p28 = scmp.ne.s32.totalorder %s23, %s25
      %p29 = scmp.eq.s32.totalorder %s15, 0
      %p30 = por %p28, %p29
      %p31 = scmp.ne.s32.totalorder %s23, %s25
      %p32 = scmp.eq.s32.totalorder %s20, 3
      %p33 = por %p31, %p32
      %p34 = scmp.ne.s32.totalorder %s25, %s26
      %p35 = scmp.eq.s32.totalorder %s20, 0
      %p36 = por %p34, %p35
      %p37 = scmp.ne.s32.totalorder %s25, %s26
      %p38 = scmp.eq.s32.totalorder %s21, 3
      %p39 = por %p37, %p38
      %p41 = scmp.ne.s32.totalorder %s26, %s40
      %p42 = scmp.eq.s32.totalorder %s21, 0
      %p43 = por %p41, %p42
      %s44 = ssub.s32 %s15, %s22
      %p45 = scmp.eq.s32.totalorder %s44, 0
      %s47 = sadd.s32 %s46, 1
      %s48 = scalar_select %p45, %s46, %s47
      %p51 = pneg %p45
      %p52 = scmp.eq.s32.totalorder %s15, 3
      %p53 = por %p51, %p52
      %p54 = scmp.ne.s32.totalorder %s46, %s49
      %p55 = scmp.eq.s32.totalorder %s15, 0
      %p56 = por %p54, %p55
      %p57 = scmp.ne.s32.totalorder %s46, %s49
      %p58 = scmp.eq.s32.totalorder %s20, 3
      %p59 = por %p57, %p58
      %p60 = scmp.ne.s32.totalorder %s49, %s50
      %p61 = scmp.eq.s32.totalorder %s20, 0
      %p62 = por %p60, %p61
      %p63 = scmp.ne.s32.totalorder %s49, %s50
      %p64 = scmp.eq.s32.totalorder %s21, 3
      %p65 = por %p63, %p64
      %p67 = scmp.ne.s32.totalorder %s50, %s66
      %p68 = scmp.eq.s32.totalorder %s21, 0
      %p69 = por %p67, %p68
      %s70 = ssub.s32 %s15, %s22
      %p71 = scmp.eq.s32.totalorder %s70, 0
      %s73 = sadd.s32 %s72, 1
      %s74 = scalar_select %p71, %s72, %s73
      %p77 = pneg %p71
      %p78 = scmp.eq.s32.totalorder %s15, 3
      %p79 = por %p77, %p78
      %p80 = scmp.ne.s32.totalorder %s72, %s75
      %p81 = scmp.eq.s32.totalorder %s15, 0
      %p82 = por %p80, %p81
      %p83 = scmp.ne.s32.totalorder %s72, %s75
      %p84 = scmp.eq.s32.totalorder %s20, 3
      %p85 = por %p83, %p84
      %p86 = scmp.ne.s32.totalorder %s75, %s76
      %p87 = scmp.eq.s32.totalorder %s20, 0
      %p88 = por %p86, %p87
      %p89 = scmp.ne.s32.totalorder %s75, %s76
      %p90 = scmp.eq.s32.totalorder %s21, 3
      %p91 = por %p89, %p90
      %p93 = scmp.ne.s32.totalorder %s76, %s92
      %p94 = scmp.eq.s32.totalorder %s21, 0
      %p95 = por %p93, %p94
      %p96 = scmp.le.s32.totalorder 1, %s15
      %p97 = scmp.lt.s32.totalorder %s15, 5
      %p98 = pnand %p96, %p97
      %p99 = pneg %p98
      // Predicated region
      $region9: #{tpu_custom_call.1} parent=5 // pred_check
        _
      $region10: #{tpu_custom_call.1} parent=5 // pred_check_branch
        %101 = sbr.rel (%p98) target = $region12
      $region11: #{tpu_custom_call.1} parent=5 // pred_region
        %s102 = ssub.s32 %s15, 1
        // Predicated region
        $region13: #{tpu_custom_call.1} parent=11 // pred_check
          %p103 = pneg %p36
        $region14: #{tpu_custom_call.1} parent=11 // pred_check_branch
          %105 = sbr.rel (%p103) target = $region16
        $region15: #{tpu_custom_call.1} parent=11 // pred_region
          %s107 = ssub.s32 2048, 2048
          %108 = vsyncadd [#allocation3], %s107
          %s109 = sshll.u32 [#allocation2], 4
          %s110 = int_to_ptr.vmem [resolvable:$true] %s109
          %115 = dma.hbm_to_vmem [thread:$0]  %s0, 2048, %s110, [#allocation3], 256, 256, 16
        $region16: #{tpu_custom_call.1} parent=11 // pred_fallthru
          _
      $region12: #{tpu_custom_call.1} parent=5 // pred_fallthru
        _
      %p116 = scmp.lt.s32.totalorder %s15, 4
      // Predicated region
      $region17: #{tpu_custom_call.1} parent=5 // pred_check
        %p117 = pneg %p116
      $region18: #{tpu_custom_call.1} parent=5 // pred_check_branch
        %119 = sbr.rel (%p117) target = $region20
      $region19: #{tpu_custom_call.1} parent=5 // pred_region
        // Predicated region
        $region21: #{tpu_custom_call.1} parent=19 // pred_check
          %p120 = pneg %p56
        $region22: #{tpu_custom_call.1} parent=19 // pred_check_branch
          %122 = sbr.rel (%p120) target = $region24
        $region23: #{tpu_custom_call.1} parent=19 // pred_region
          %s123 = sand.u32 %s46, 1
          %s124 = scalar_lea.sflag [#allocation6], %s123
          %s125 = sand.u32 %s46, 1
          %s126 = smul.addr %s125, 8
          %s127 = scalar_lea.vmem [#allocation5], %s126
          %s129 = ssub.s32 128, 128
          %130 = vsyncadd %s124, %s129
          %s131 = smul.addr %s15, 128
          %s132 = scalar_lea.hbm %s1, %s131
          %s134 = sshll.u32 %s127, 4
          %s135 = int_to_ptr.vmem [resolvable:$true] %s134
          %137 = dma.hbm_to_vmem [thread:$0]  %s132, 128, %s135, %s124
        $region24: #{tpu_custom_call.1} parent=19 // pred_fallthru
          _
      $region20: #{tpu_custom_call.1} parent=5 // pred_fallthru
        _
      %p138 = scmp.le.s32.totalorder 1, %s15
      %p139 = scmp.lt.s32.totalorder %s15, 5
      %p140 = pnand %p138, %p139
      %p141 = pneg %p140
      // Predicated region
      $region25: #{tpu_custom_call.1} parent=5 // pred_check
        _
      $region26: #{tpu_custom_call.1} parent=5 // pred_check_branch
        %143 = sbr.rel (%p140) target = $region28
      $region27: #{tpu_custom_call.1} parent=5 // pred_region
        %s144 = ssub.s32 %s15, 1
        // Predicated region
        $region29: #{tpu_custom_call.1} parent=27 // pred_check
          %p145 = pneg %p36
        $region30: #{tpu_custom_call.1} parent=27 // pred_check_branch
          %147 = sbr.rel (%p145) target = $region32
        $region31: #{tpu_custom_call.1} parent=27 // pred_region
          %148 = dma.done [#allocation3], 2048
        $region32: #{tpu_custom_call.1} parent=27 // pred_fallthru
          _
        %s149 = sand.u32 %s49, 1
        %s150 = scalar_lea.sflag [#allocation6], %s149
        %s151 = sand.u32 %s49, 1
        %s152 = smul.addr %s151, 8
        %s153 = scalar_lea.vmem [#allocation5], %s152
        // Predicated region
        $region33: #{tpu_custom_call.1} parent=27 // pred_check
          %p154 = pneg %p62
        $region34: #{tpu_custom_call.1} parent=27 // pred_check_branch
          %156 = sbr.rel (%p154) target = $region36
        $region35: #{tpu_custom_call.1} parent=27 // pred_region
          %157 = dma.done %s150, 128
        $region36: #{tpu_custom_call.1} parent=27 // pred_fallthru
          _
        %p158 = pneg %p36
        %p159 = pneg %p33
        %s160 = sand.u32 %s49, 1
        %s161 = scalar_lea.sflag [#allocation6], %s160
        %s162 = sand.u32 %s49, 1
        %s163 = smul.addr %s162, 8
        %s164 = scalar_lea.vmem [#allocation5], %s163
        %p165 = pneg %p62
        %p166 = pneg %p59
        %p167 = pneg %p88
        %p168 = pneg %p85
        %s169 = sand.u32 %s75, 1
        %s170 = scalar_lea.sflag [#allocation4], %s169
        %s171 = sand.u32 %s75, 1
        %s172 = smul.addr %s171, 16
        %s173 = scalar_lea.vmem [#allocation7], %s172
        %v174 = vld [vmem:[%s153] sm:$0xff]
        %v175 = vld [vmem:[#allocation2] sm:$0xff]
        %v176 = vld [vmem:[#allocation2 + $0x8] sm:$0xff]
        %v177 = vld [vmem:[#allocation2 + $0x10] sm:$0xff]
        %v178 = vld [vmem:[#allocation2 + $0x18] sm:$0xff]
        %v179 = vld [vmem:[#allocation2 + $0x20] sm:$0xff]
        %v180 = vld [vmem:[#allocation2 + $0x28] sm:$0xff]
        %v181 = vld [vmem:[#allocation2 + $0x30] sm:$0xff]
        %v182 = vld [vmem:[#allocation2 + $0x38] sm:$0xff]
        %v183 = vld [vmem:[#allocation2 + $0x40] sm:$0xff]
        %v184 = vld [vmem:[#allocation2 + $0x48] sm:$0xff]
        %v185 = vld [vmem:[#allocation2 + $0x50] sm:$0xff]
        %v186 = vld [vmem:[#allocation2 + $0x58] sm:$0xff]
        %v187 = vld [vmem:[#allocation2 + $0x60] sm:$0xff]
        %v188 = vld [vmem:[#allocation2 + $0x68] sm:$0xff]
        %v189 = vld [vmem:[#allocation2 + $0x70] sm:$0xff]
        %v190 = vld [vmem:[#allocation2 + $0x78] sm:$0xff]
        %vm191 = vcmask 523264
        %v193 = vsel %vm191, %v174, 0
        %v195 = vand.u32 %v176, 4294901760
        %196 = vmatprep.subr.mxu0 %v195
        %v197 = vand.u32 %v175, 4294901760
        %198 = vmatpush1.msra.mxu0 %v197
        %v199 = vand.u32 %v178, 4294901760
        %200 = vmatprep.subr.mxu0 %v199
        %v201 = vand.u32 %v177, 4294901760
        %202 = vmatpush1.msra.mxu0 %v201
        %v203 = vand.u32 %v180, 4294901760
        %204 = vmatprep.subr.mxu0 %v203
        %v205 = vand.u32 %v179, 4294901760
        %206 = vmatpush1.msra.mxu0 %v205
        %v207 = vand.u32 %v182, 4294901760
        %208 = vmatprep.subr.mxu0 %v207
        %v209 = vand.u32 %v181, 4294901760
        %210 = vmatpush1.msra.mxu0 %v209
        %v211 = vand.u32 %v184, 4294901760
        %212 = vmatprep.subr.mxu0 %v211
        %v213 = vand.u32 %v183, 4294901760
        %214 = vmatpush1.msra.mxu0 %v213
        %v215 = vand.u32 %v186, 4294901760
        %216 = vmatprep.subr.mxu0 %v215
        %v217 = vand.u32 %v185, 4294901760
        %218 = vmatpush1.msra.mxu0 %v217
        %v219 = vand.u32 %v188, 4294901760
        %220 = vmatprep.subr.mxu0 %v219
        %v221 = vand.u32 %v187, 4294901760
        %222 = vmatpush1.msra.mxu0 %v221
        %v223 = vand.u32 %v190, 4294901760
        %224 = vmatprep.subr.mxu0 %v223
        %v225 = vand.u32 %v189, 4294901760
        %226 = vmatpush1.msra.mxu0 %v225
        %227 = vmatprep.subr.mxu0 0.0
        %228 = vmatpush1.msra.mxu0 0.0
        %229 = vmatprep.subr.mxu0 0.0
        %230 = vmatpush1.msra.mxu0 0.0
        %231 = vmatprep.subr.mxu0 0.0
        %232 = vmatpush1.msra.mxu0 0.0
        %233 = vmatprep.subr.mxu0 0.0
        %234 = vmatpush1.msra.mxu0 0.0
        %235 = vmatprep.subr.mxu0 0.0
        %236 = vmatpush1.msra.mxu0 0.0
        %237 = vmatprep.subr.mxu0 0.0
        %238 = vmatpush1.msra.mxu0 0.0
        %239 = vmatprep.subr.mxu0 0.0
        %240 = vmatpush1.msra.mxu0 0.0
        %241 = vmatprep.subr.mxu0 0.0
        %242 = vmatpush1.msra.mxu0 0.0
        %243 = vmatprep.subr.mxu0 0.0
        %244 = vmatpush1.msra.mxu0 0.0
        %245 = vmatprep.subr.mxu0 0.0
        %246 = vmatpush1.msra.mxu0 0.0
        %247 = vmatprep.subr.mxu0 0.0
        %248 = vmatpush1.msra.mxu0 0.0
        %249 = vmatprep.subr.mxu0 0.0
        %250 = vmatpush1.msra.mxu0 0.0
        %251 = vmatprep.subr.mxu0 0.0
        %252 = vmatpush1.msra.mxu0 0.0
        %253 = vmatprep.subr.mxu0 0.0
        %254 = vmatpush1.msra.mxu0 0.0
        %255 = vmatprep.subr.mxu0 0.0
        %256 = vmatpush1.msra.mxu0 0.0
        %257 = vmatprep.subr.mxu0 0.0
        %258 = vmatpush1.msra.mxu0 0.0
        %259 = vmatprep.subr.mxu0 0.0
        %260 = vmatpush1.msra.mxu0 0.0
        %261 = vmatprep.subr.mxu0 0.0
        %262 = vmatpush1.msra.mxu0 0.0
        %263 = vmatprep.subr.mxu0 0.0
        %264 = vmatpush1.msra.mxu0 0.0
        %265 = vmatprep.subr.mxu0 0.0
        %266 = vmatpush1.msra.mxu0 0.0
        %267 = vmatprep.subr.mxu0 0.0
        %268 = vmatpush1.msra.mxu0 0.0
        %269 = vmatprep.subr.mxu0 0.0
        %270 = vmatpush1.msra.mxu0 0.0
        %271 = vmatprep.subr.mxu0 0.0
        %272 = vmatpush1.msra.mxu0 0.0
        %273 = vmatprep.subr.mxu0 0.0
        %274 = vmatpush1.msra.mxu0 0.0
        %275 = vmatprep.mubr.f32.mxu0 0.0
        %v276 = vand.u32 %v193, 4294901760
        %v277 = vsub.f32 %v193, %v276
        %v278 = vand.u32 %v277, 4294901760
        %v279 = vsub.f32 %v277, %v278
        %v280 = vand.u32 %v279, 4294901760
        %281 = vmatmul.mubr.f32.gmra.mrb[0].mxu0 %v280
        %v282 = vpop.f32.mrb[0].mxu0
        %v283 = vadd.f32 0.0, %v282
        %v284 = vpop.f32.mrb[0].mxu0
        %v285 = vadd.f32 0.0, %v284
        %286 = vdwg.mxu0
        %v287 = vand.u32 %v176, 4294901760
        %v288 = vsub.f32 %v176, %v287
        %v289 = vand.u32 %v288, 4294901760
        %v290 = vsub.f32 %v288, %v289
        %v291 = vand.u32 %v290, 4294901760
        %292 = vmatprep.subr.mxu0 %v291
        %v293 = vand.u32 %v175, 4294901760
        %v294 = vsub.f32 %v175, %v293
        %v295 = vand.u32 %v294, 4294901760
        %v296 = vsub.f32 %v294, %v295
        %v297 = vand.u32 %v296, 4294901760
        %298 = vmatpush1.msra.mxu0 %v297
        %v299 = vand.u32 %v178, 4294901760
        %v300 = vsub.f32 %v178, %v299
        %v301 = vand.u32 %v300, 4294901760
        %v302 = vsub.f32 %v300, %v301
        %v303 = vand.u32 %v302, 4294901760
        %304 = vmatprep.subr.mxu0 %v303
        %v305 = vand.u32 %v177, 4294901760
        %v306 = vsub.f32 %v177, %v305
        %v307 = vand.u32 %v306, 4294901760
        %v308 = vsub.f32 %v306, %v307
        %v309 = vand.u32 %v308, 4294901760
        %310 = vmatpush1.msra.mxu0 %v309
        %v311 = vand.u32 %v180, 4294901760
        %v312 = vsub.f32 %v180, %v311
        %v313 = vand.u32 %v312, 4294901760
        %v314 = vsub.f32 %v312, %v313
        %v315 = vand.u32 %v314, 4294901760
        %316 = vmatprep.subr.mxu0 %v315
        %v317 = vand.u32 %v179, 4294901760
        %v318 = vsub.f32 %v179, %v317
        %v319 = vand.u32 %v318, 4294901760
        %v320 = vsub.f32 %v318, %v319
        %v321 = vand.u32 %v320, 4294901760
        %322 = vmatpush1.msra.mxu0 %v321
        %v323 = vand.u32 %v182, 4294901760
        %v324 = vsub.f32 %v182, %v323
        %v325 = vand.u32 %v324, 4294901760
        %v326 = vsub.f32 %v324, %v325
        %v327 = vand.u32 %v326, 4294901760
        %328 = vmatprep.subr.mxu0 %v327
        %v329 = vand.u32 %v181, 4294901760
        %v330 = vsub.f32 %v181, %v329
        %v331 = vand.u32 %v330, 4294901760
        %v332 = vsub.f32 %v330, %v331
        %v333 = vand.u32 %v332, 4294901760
        %334 = vmatpush1.msra.mxu0 %v333
        %v335 = vand.u32 %v184, 4294901760
        %v336 = vsub.f32 %v184, %v335
        %v337 = vand.u32 %v336, 4294901760
        %v338 = vsub.f32 %v336, %v337
        %v339 = vand.u32 %v338, 4294901760
        %340 = vmatprep.subr.mxu0 %v339
        %v341 = vand.u32 %v183, 4294901760
        %v342 = vsub.f32 %v183, %v341
        %v343 = vand.u32 %v342, 4294901760
        %v344 = vsub.f32 %v342, %v343
        %v345 = vand.u32 %v344, 4294901760
        %346 = vmatpush1.msra.mxu0 %v345
        %v347 = vand.u32 %v186, 4294901760
        %v348 = vsub.f32 %v186, %v347
        %v349 = vand.u32 %v348, 4294901760
        %v350 = vsub.f32 %v348, %v349
        %v351 = vand.u32 %v350, 4294901760
        %352 = vmatprep.subr.mxu0 %v351
        %v353 = vand.u32 %v185, 4294901760
        %v354 = vsub.f32 %v185, %v353
        %v355 = vand.u32 %v354, 4294901760
        %v356 = vsub.f32 %v354, %v355
        %v357 = vand.u32 %v356, 4294901760
        %358 = vmatpush1.msra.mxu0 %v357
        %v359 = vand.u32 %v188, 4294901760
        %v360 = vsub.f32 %v188, %v359
        %v361 = vand.u32 %v360, 4294901760
        %v362 = vsub.f32 %v360, %v361
        %v363 = vand.u32 %v362, 4294901760
        %364 = vmatprep.subr.mxu0 %v363
        %v365 = vand.u32 %v187, 4294901760
        %v366 = vsub.f32 %v187, %v365
        %v367 = vand.u32 %v366, 4294901760
        %v368 = vsub.f32 %v366, %v367
        %v369 = vand.u32 %v368, 4294901760
        %370 = vmatpush1.msra.mxu0 %v369
        %v371 = vand.u32 %v190, 4294901760
        %v372 = vsub.f32 %v190, %v371
        %v373 = vand.u32 %v372, 4294901760
        %v374 = vsub.f32 %v372, %v373
        %v375 = vand.u32 %v374, 4294901760
        %376 = vmatprep.subr.mxu0 %v375
        %v377 = vand.u32 %v189, 4294901760
        %v378 = vsub.f32 %v189, %v377
        %v379 = vand.u32 %v378, 4294901760
        %v380 = vsub.f32 %v378, %v379
        %v381 = vand.u32 %v380, 4294901760
        %382 = vmatpush1.msra.mxu0 %v381
        %383 = vmatprep.subr.mxu0 0.0
        %384 = vmatpush1.msra.mxu0 0.0
        %385 = vmatprep.subr.mxu0 0.0
        %386 = vmatpush1.msra.mxu0 0.0
        %387 = vmatprep.subr.mxu0 0.0
        %388 = vmatpush1.msra.mxu0 0.0
        %389 = vmatprep.subr.mxu0 0.0
        %390 = vmatpush1.msra.mxu0 0.0
        %391 = vmatprep.subr.mxu0 0.0
        %392 = vmatpush1.msra.mxu0 0.0
        %393 = vmatprep.subr.mxu0 0.0
        %394 = vmatpush1.msra.mxu0 0.0
        %395 = vmatprep.subr.mxu0 0.0
        %396 = vmatpush1.msra.mxu0 0.0
        %397 = vmatprep.subr.mxu0 0.0
        %398 = vmatpush1.msra.mxu0 0.0
        %399 = vmatprep.subr.mxu0 0.0
        %400 = vmatpush1.msra.mxu0 0.0
        %401 = vmatprep.subr.mxu0 0.0
        %402 = vmatpush1.msra.mxu0 0.0
        %403 = vmatprep.subr.mxu0 0.0
        %404 = vmatpush1.msra.mxu0 0.0
        %405 = vmatprep.subr.mxu0 0.0
        %406 = vmatpush1.msra.mxu0 0.0
        %407 = vmatprep.subr.mxu0 0.0
        %408 = vmatpush1.msra.mxu0 0.0
        %409 = vmatprep.subr.mxu0 0.0
        %410 = vmatpush1.msra.mxu0 0.0
        %411 = vmatprep.subr.mxu0 0.0
        %412 = vmatpush1.msra.mxu0 0.0
        %413 = vmatprep.subr.mxu0 0.0
        %414 = vmatpush1.msra.mxu0 0.0
        %415 = vmatprep.subr.mxu0 0.0
        %416 = vmatpush1.msra.mxu0 0.0
        %417 = vmatprep.subr.mxu0 0.0
        %418 = vmatpush1.msra.mxu0 0.0
        %419 = vmatprep.subr.mxu0 0.0
        %420 = vmatpush1.msra.mxu0 0.0
        %421 = vmatprep.subr.mxu0 0.0
        %422 = vmatpush1.msra.mxu0 0.0
        %423 = vmatprep.subr.mxu0 0.0
        %424 = vmatpush1.msra.mxu0 0.0
        %425 = vmatprep.subr.mxu0 0.0
        %426 = vmatpush1.msra.mxu0 0.0
        %427 = vmatprep.subr.mxu0 0.0
        %428 = vmatpush1.msra.mxu0 0.0
        %429 = vmatprep.subr.mxu0 0.0
        %430 = vmatpush1.msra.mxu0 0.0
        %431 = vmatprep.mubr.f32.mxu0 0.0
        %v432 = vand.u32 %v193, 4294901760
        %433 = vmatmul.mubr.f32.gmra.mrb[0].mxu0 %v432
        %v434 = vpop.f32.mrb[0].mxu0
        %v435 = vadd.f32 %v283, %v434
        %v436 = vpop.f32.mrb[0].mxu0
        %v437 = vadd.f32 %v285, %v436
        %438 = vdwg.mxu0
        %v439 = vand.u32 %v176, 4294901760
        %v440 = vsub.f32 %v176, %v439
        %441 = vmatprep.subr.mxu0 %v440
        %v442 = vand.u32 %v175, 4294901760
        %v443 = vsub.f32 %v175, %v442
        %444 = vmatpush1.msra.mxu0 %v443
        %v445 = vand.u32 %v178, 4294901760
        %v446 = vsub.f32 %v178, %v445
        %447 = vmatprep.subr.mxu0 %v446
        %v448 = vand.u32 %v177, 4294901760
        %v449 = vsub.f32 %v177, %v448
        %450 = vmatpush1.msra.mxu0 %v449
        %v451 = vand.u32 %v180, 4294901760
        %v452 = vsub.f32 %v180, %v451
        %453 = vmatprep.subr.mxu0 %v452
        %v454 = vand.u32 %v179, 4294901760
        %v455 = vsub.f32 %v179, %v454
        %456 = vmatpush1.msra.mxu0 %v455
        %v457 = vand.u32 %v182, 4294901760
        %v458 = vsub.f32 %v182, %v457
        %459 = vmatprep.subr.mxu0 %v458
        %v460 = vand.u32 %v181, 4294901760
        %v461 = vsub.f32 %v181, %v460
        %462 = vmatpush1.msra.mxu0 %v461
        %v463 = vand.u32 %v184, 4294901760
        %v464 = vsub.f32 %v184, %v463
        %465 = vmatprep.subr.mxu0 %v464
        %v466 = vand.u32 %v183, 4294901760
        %v467 = vsub.f32 %v183, %v466
        %468 = vmatpush1.msra.mxu0 %v467
        %v469 = vand.u32 %v186, 4294901760
        %v470 = vsub.f32 %v186, %v469
        %471 = vmatprep.subr.mxu0 %v470
        %v472 = vand.u32 %v185, 4294901760
        %v473 = vsub.f32 %v185, %v472
        %474 = vmatpush1.msra.mxu0 %v473
        %v475 = vand.u32 %v188, 4294901760
        %v476 = vsub.f32 %v188, %v475
        %477 = vmatprep.subr.mxu0 %v476
        %v478 = vand.u32 %v187, 4294901760
        %v479 = vsub.f32 %v187, %v478
        %480 = vmatpush1.msra.mxu0 %v479
        %v481 = vand.u32 %v190, 4294901760
        %v482 = vsub.f32 %v190, %v481
        %483 = vmatprep.subr.mxu0 %v482
        %v484 = vand.u32 %v189, 4294901760
        %v485 = vsub.f32 %v189, %v484
        %486 = vmatpush1.msra.mxu0 %v485
        %487 = vmatprep.subr.mxu0 0.0
        %488 = vmatpush1.msra.mxu0 0.0
        %489 = vmatprep.subr.mxu0 0.0
        %490 = vmatpush1.msra.mxu0 0.0
        %491 = vmatprep.subr.mxu0 0.0
        %492 = vmatpush1.msra.mxu0 0.0
        %493 = vmatprep.subr.mxu0 0.0
        %494 = vmatpush1.msra.mxu0 0.0
        %495 = vmatprep.subr.mxu0 0.0
        %496 = vmatpush1.msra.mxu0 0.0
        %497 = vmatprep.subr.mxu0 0.0
        %498 = vmatpush1.msra.mxu0 0.0
        %499 = vmatprep.subr.mxu0 0.0
        %500 = vmatpush1.msra.mxu0 0.0
        %501 = vmatprep.subr.mxu0 0.0
        %502 = vmatpush1.msra.mxu0 0.0
        %503 = vmatprep.subr.mxu0 0.0
        %504 = vmatpush1.msra.mxu0 0.0
        %505 = vmatprep.subr.mxu0 0.0
        %506 = vmatpush1.msra.mxu0 0.0
        %507 = vmatprep.subr.mxu0 0.0
        %508 = vmatpush1.msra.mxu0 0.0
        %509 = vmatprep.subr.mxu0 0.0
        %510 = vmatpush1.msra.mxu0 0.0
        %511 = vmatprep.subr.mxu0 0.0
        %512 = vmatpush1.msra.mxu0 0.0
        %513 = vmatprep.subr.mxu0 0.0
        %514 = vmatpush1.msra.mxu0 0.0
        %515 = vmatprep.subr.mxu0 0.0
        %516 = vmatpush1.msra.mxu0 0.0
        %517 = vmatprep.subr.mxu0 0.0
        %518 = vmatpush1.msra.mxu0 0.0
        %519 = vmatprep.subr.mxu0 0.0
        %520 = vmatpush1.msra.mxu0 0.0
        %521 = vmatprep.subr.mxu0 0.0
        %522 = vmatpush1.msra.mxu0 0.0
        %523 = vmatprep.subr.mxu0 0.0
        %524 = vmatpush1.msra.mxu0 0.0
        %525 = vmatprep.subr.mxu0 0.0
        %526 = vmatpush1.msra.mxu0 0.0
        %527 = vmatprep.subr.mxu0 0.0
        %528 = vmatpush1.msra.mxu0 0.0
        %529 = vmatprep.subr.mxu0 0.0
        %530 = vmatpush1.msra.mxu0 0.0
        %531 = vmatprep.subr.mxu0 0.0
        %532 = vmatpush1.msra.mxu0 0.0
        %533 = vmatprep.subr.mxu0 0.0
        %534 = vmatpush1.msra.mxu0 0.0
        %535 = vmatprep.mubr.f32.mxu0 0.0
        %v536 = vand.u32 %v193, 4294901760
        %v537 = vsub.f32 %v193, %v536
        %538 = vmatmul.mubr.f32.gmra.mrb[0].mxu0 %v537
        %v539 = vpop.f32.mrb[0].mxu0
        %v540 = vadd.f32 %v435, %v539
        %v541 = vpop.f32.mrb[0].mxu0
        %v542 = vadd.f32 %v437, %v541
        %543 = vdwg.mxu0
        %v544 = vand.u32 %v176, 4294901760
        %545 = vmatprep.subr.mxu0 %v544
        %v546 = vand.u32 %v175, 4294901760
        %547 = vmatpush1.msra.mxu0 %v546
        %v548 = vand.u32 %v178, 4294901760
        %549 = vmatprep.subr.mxu0 %v548
        %v550 = vand.u32 %v177, 4294901760
        %551 = vmatpush1.msra.mxu0 %v550
        %v552 = vand.u32 %v180, 4294901760
        %553 = vmatprep.subr.mxu0 %v552
        %v554 = vand.u32 %v179, 4294901760
        %555 = vmatpush1.msra.mxu0 %v554
        %v556 = vand.u32 %v182, 4294901760
        %557 = vmatprep.subr.mxu0 %v556
        %v558 = vand.u32 %v181, 4294901760
        %559 = vmatpush1.msra.mxu0 %v558
        %v560 = vand.u32 %v184, 4294901760
        %561 = vmatprep.subr.mxu0 %v560
        %v562 = vand.u32 %v183, 4294901760
        %563 = vmatpush1.msra.mxu0 %v562
        %v564 = vand.u32 %v186, 4294901760
        %565 = vmatprep.subr.mxu0 %v564
        %v566 = vand.u32 %v185, 4294901760
        %567 = vmatpush1.msra.mxu0 %v566
        %v568 = vand.u32 %v188, 4294901760
        %569 = vmatprep.subr.mxu0 %v568
        %v570 = vand.u32 %v187, 4294901760
        %571 = vmatpush1.msra.mxu0 %v570
        %v572 = vand.u32 %v190, 4294901760
        %573 = vmatprep.subr.mxu0 %v572
        %v574 = vand.u32 %v189, 4294901760
        %575 = vmatpush1.msra.mxu0 %v574
        %576 = vmatprep.subr.mxu0 0.0
        %577 = vmatpush1.msra.mxu0 0.0
        %578 = vmatprep.subr.mxu0 0.0
        %579 = vmatpush1.msra.mxu0 0.0
        %580 = vmatprep.subr.mxu0 0.0
        %581 = vmatpush1.msra.mxu0 0.0
        %582 = vmatprep.subr.mxu0 0.0
        %583 = vmatpush1.msra.mxu0 0.0
        %584 = vmatprep.subr.mxu0 0.0
        %585 = vmatpush1.msra.mxu0 0.0
        %586 = vmatprep.subr.mxu0 0.0
        %587 = vmatpush1.msra.mxu0 0.0
        %588 = vmatprep.subr.mxu0 0.0
        %589 = vmatpush1.msra.mxu0 0.0
        %590 = vmatprep.subr.mxu0 0.0
        %591 = vmatpush1.msra.mxu0 0.0
        %592 = vmatprep.subr.mxu0 0.0
        %593 = vmatpush1.msra.mxu0 0.0
        %594 = vmatprep.subr.mxu0 0.0
        %595 = vmatpush1.msra.mxu0 0.0
        %596 = vmatprep.subr.mxu0 0.0
        %597 = vmatpush1.msra.mxu0 0.0
        %598 = vmatprep.subr.mxu0 0.0
        %599 = vmatpush1.msra.mxu0 0.0
        %600 = vmatprep.subr.mxu0 0.0
        %601 = vmatpush1.msra.mxu0 0.0
        %602 = vmatprep.subr.mxu0 0.0
        %603 = vmatpush1.msra.mxu0 0.0
        %604 = vmatprep.subr.mxu0 0.0
        %605 = vmatpush1.msra.mxu0 0.0
        %606 = vmatprep.subr.mxu0 0.0
        %607 = vmatpush1.msra.mxu0 0.0
        %608 = vmatprep.subr.mxu0 0.0
        %609 = vmatpush1.msra.mxu0 0.0
        %610 = vmatprep.subr.mxu0 0.0
        %611 = vmatpush1.msra.mxu0 0.0
        %612 = vmatprep.subr.mxu0 0.0
        %613 = vmatpush1.msra.mxu0 0.0
        %614 = vmatprep.subr.mxu0 0.0
        %615 = vmatpush1.msra.mxu0 0.0
        %616 = vmatprep.subr.mxu0 0.0
        %617 = vmatpush1.msra.mxu0 0.0
        %618 = vmatprep.subr.mxu0 0.0
        %619 = vmatpush1.msra.mxu0 0.0
        %620 = vmatprep.subr.mxu0 0.0
        %621 = vmatpush1.msra.mxu0 0.0
        %622 = vmatprep.subr.mxu0 0.0
        %623 = vmatpush1.msra.mxu0 0.0
        %624 = vmatprep.mubr.f32.mxu0 0.0
        %v625 = vand.u32 %v193, 4294901760
        %v626 = vsub.f32 %v193, %v625
        %v627 = vand.u32 %v626, 4294901760
        %628 = vmatmul.mubr.f32.gmra.mrb[0].mxu0 %v627
        %v629 = vpop.f32.mrb[0].mxu0
        %v630 = vadd.f32 %v540, %v629
        %v631 = vpop.f32.mrb[0].mxu0
        %v632 = vadd.f32 %v542, %v631
        %633 = vdwg.mxu0
        %v634 = vand.u32 %v176, 4294901760
        %v635 = vsub.f32 %v176, %v634
        %v636 = vand.u32 %v635, 4294901760
        %637 = vmatprep.subr.mxu0 %v636
        %v638 = vand.u32 %v175, 4294901760
        %v639 = vsub.f32 %v175, %v638
        %v640 = vand.u32 %v639, 4294901760
        %641 = vmatpush1.msra.mxu0 %v640
        %v642 = vand.u32 %v178, 4294901760
        %v643 = vsub.f32 %v178, %v642
        %v644 = vand.u32 %v643, 4294901760
        %645 = vmatprep.subr.mxu0 %v644
        %v646 = vand.u32 %v177, 4294901760
        %v647 = vsub.f32 %v177, %v646
        %v648 = vand.u32 %v647, 4294901760
        %649 = vmatpush1.msra.mxu0 %v648
        %v650 = vand.u32 %v180, 4294901760
        %v651 = vsub.f32 %v180, %v650
        %v652 = vand.u32 %v651, 4294901760
        %653 = vmatprep.subr.mxu0 %v652
        %v654 = vand.u32 %v179, 4294901760
        %v655 = vsub.f32 %v179, %v654
        %v656 = vand.u32 %v655, 4294901760
        %657 = vmatpush1.msra.mxu0 %v656
        %v658 = vand.u32 %v182, 4294901760
        %v659 = vsub.f32 %v182, %v658
        %v660 = vand.u32 %v659, 4294901760
        %661 = vmatprep.subr.mxu0 %v660
        %v662 = vand.u32 %v181, 4294901760
        %v663 = vsub.f32 %v181, %v662
        %v664 = vand.u32 %v663, 4294901760
        %665 = vmatpush1.msra.mxu0 %v664
        %v666 = vand.u32 %v184, 4294901760
        %v667 = vsub.f32 %v184, %v666
        %v668 = vand.u32 %v667, 4294901760
        %669 = vmatprep.subr.mxu0 %v668
        %v670 = vand.u32 %v183, 4294901760
        %v671 = vsub.f32 %v183, %v670
        %v672 = vand.u32 %v671, 4294901760
        %673 = vmatpush1.msra.mxu0 %v672
        %v674 = vand.u32 %v186, 4294901760
        %v675 = vsub.f32 %v186, %v674
        %v676 = vand.u32 %v675, 4294901760
        %677 = vmatprep.subr.mxu0 %v676
        %v678 = vand.u32 %v185, 4294901760
        %v679 = vsub.f32 %v185, %v678
        %v680 = vand.u32 %v679, 4294901760
        %681 = vmatpush1.msra.mxu0 %v680
        %v682 = vand.u32 %v188, 4294901760
        %v683 = vsub.f32 %v188, %v682
        %v684 = vand.u32 %v683, 4294901760
        %685 = vmatprep.subr.mxu0 %v684
        %v686 = vand.u32 %v187, 4294901760
        %v687 = vsub.f32 %v187, %v686
        %v688 = vand.u32 %v687, 4294901760
        %689 = vmatpush1.msra.mxu0 %v688
        %v690 = vand.u32 %v190, 4294901760
        %v691 = vsub.f32 %v190, %v690
        %v692 = vand.u32 %v691, 4294901760
        %693 = vmatprep.subr.mxu0 %v692
        %v694 = vand.u32 %v189, 4294901760
        %v695 = vsub.f32 %v189, %v694
        %v696 = vand.u32 %v695, 4294901760
        %697 = vmatpush1.msra.mxu0 %v696
        %698 = vmatprep.subr.mxu0 0.0
        %699 = vmatpush1.msra.mxu0 0.0
        %700 = vmatprep.subr.mxu0 0.0
        %701 = vmatpush1.msra.mxu0 0.0
        %702 = vmatprep.subr.mxu0 0.0
        %703 = vmatpush1.msra.mxu0 0.0
        %704 = vmatprep.subr.mxu0 0.0
        %705 = vmatpush1.msra.mxu0 0.0
        %706 = vmatprep.subr.mxu0 0.0
        %707 = vmatpush1.msra.mxu0 0.0
        %708 = vmatprep.subr.mxu0 0.0
        %709 = vmatpush1.msra.mxu0 0.0
        %710 = vmatprep.subr.mxu0 0.0
        %711 = vmatpush1.msra.mxu0 0.0
        %712 = vmatprep.subr.mxu0 0.0
        %713 = vmatpush1.msra.mxu0 0.0
        %714 = vmatprep.subr.mxu0 0.0
        %715 = vmatpush1.msra.mxu0 0.0
        %716 = vmatprep.subr.mxu0 0.0
        %717 = vmatpush1.msra.mxu0 0.0
        %718 = vmatprep.subr.mxu0 0.0
        %719 = vmatpush1.msra.mxu0 0.0
        %720 = vmatprep.subr.mxu0 0.0
        %721 = vmatpush1.msra.mxu0 0.0
        %722 = vmatprep.subr.mxu0 0.0
        %723 = vmatpush1.msra.mxu0 0.0
        %724 = vmatprep.subr.mxu0 0.0
        %725 = vmatpush1.msra.mxu0 0.0
        %726 = vmatprep.subr.mxu0 0.0
        %727 = vmatpush1.msra.mxu0 0.0
        %728 = vmatprep.subr.mxu0 0.0
        %729 = vmatpush1.msra.mxu0 0.0
        %730 = vmatprep.subr.mxu0 0.0
        %731 = vmatpush1.msra.mxu0 0.0
        %732 = vmatprep.subr.mxu0 0.0
        %733 = vmatpush1.msra.mxu0 0.0
        %734 = vmatprep.subr.mxu0 0.0
        %735 = vmatpush1.msra.mxu0 0.0
        %736 = vmatprep.subr.mxu0 0.0
        %737 = vmatpush1.msra.mxu0 0.0
        %738 = vmatprep.subr.mxu0 0.0
        %739 = vmatpush1.msra.mxu0 0.0
        %740 = vmatprep.subr.mxu0 0.0
        %741 = vmatpush1.msra.mxu0 0.0
        %742 = vmatprep.subr.mxu0 0.0
        %743 = vmatpush1.msra.mxu0 0.0
        %744 = vmatprep.subr.mxu0 0.0
        %745 = vmatpush1.msra.mxu0 0.0
        %746 = vmatprep.mubr.f32.mxu0 0.0
        %v747 = vand.u32 %v193, 4294901760
        %748 = vmatmul.mubr.f32.gmra.mrb[0].mxu0 %v747
        %v749 = vpop.f32.mrb[0].mxu0
        %v750 = vadd.f32 %v630, %v749
        %v751 = vpop.f32.mrb[0].mxu0
        %v752 = vadd.f32 %v632, %v751
        %753 = vdwg.mxu0
        %v754 = vand.u32 %v176, 4294901760
        %755 = vmatprep.subr.mxu0 %v754
        %v756 = vand.u32 %v175, 4294901760
        %757 = vmatpush1.msra.mxu0 %v756
        %v758 = vand.u32 %v178, 4294901760
        %759 = vmatprep.subr.mxu0 %v758
        %v760 = vand.u32 %v177, 4294901760
        %761 = vmatpush1.msra.mxu0 %v760
        %v762 = vand.u32 %v180, 4294901760
        %763 = vmatprep.subr.mxu0 %v762
        %v764 = vand.u32 %v179, 4294901760
        %765 = vmatpush1.msra.mxu0 %v764
        %v766 = vand.u32 %v182, 4294901760
        %767 = vmatprep.subr.mxu0 %v766
        %v768 = vand.u32 %v181, 4294901760
        %769 = vmatpush1.msra.mxu0 %v768
        %v770 = vand.u32 %v184, 4294901760
        %771 = vmatprep.subr.mxu0 %v770
        %v772 = vand.u32 %v183, 4294901760
        %773 = vmatpush1.msra.mxu0 %v772
        %v774 = vand.u32 %v186, 4294901760
        %775 = vmatprep.subr.mxu0 %v774
        %v776 = vand.u32 %v185, 4294901760
        %777 = vmatpush1.msra.mxu0 %v776
        %v778 = vand.u32 %v188, 4294901760
        %779 = vmatprep.subr.mxu0 %v778
        %v780 = vand.u32 %v187, 4294901760
        %781 = vmatpush1.msra.mxu0 %v780
        %v782 = vand.u32 %v190, 4294901760
        %783 = vmatprep.subr.mxu0 %v782
        %v784 = vand.u32 %v189, 4294901760
        %785 = vmatpush1.msra.mxu0 %v784
        %786 = vmatprep.subr.mxu0 0.0
        %787 = vmatpush1.msra.mxu0 0.0
        %788 = vmatprep.subr.mxu0 0.0
        %789 = vmatpush1.msra.mxu0 0.0
        %790 = vmatprep.subr.mxu0 0.0
        %791 = vmatpush1.msra.mxu0 0.0
        %792 = vmatprep.subr.mxu0 0.0
        %793 = vmatpush1.msra.mxu0 0.0
        %794 = vmatprep.subr.mxu0 0.0
        %795 = vmatpush1.msra.mxu0 0.0
        %796 = vmatprep.subr.mxu0 0.0
        %797 = vmatpush1.msra.mxu0 0.0
        %798 = vmatprep.subr.mxu0 0.0
        %799 = vmatpush1.msra.mxu0 0.0
        %800 = vmatprep.subr.mxu0 0.0
        %801 = vmatpush1.msra.mxu0 0.0
        %802 = vmatprep.subr.mxu0 0.0
        %803 = vmatpush1.msra.mxu0 0.0
        %804 = vmatprep.subr.mxu0 0.0
        %805 = vmatpush1.msra.mxu0 0.0
        %806 = vmatprep.subr.mxu0 0.0
        %807 = vmatpush1.msra.mxu0 0.0
        %808 = vmatprep.subr.mxu0 0.0
        %809 = vmatpush1.msra.mxu0 0.0
        %810 = vmatprep.subr.mxu0 0.0
        %811 = vmatpush1.msra.mxu0 0.0
        %812 = vmatprep.subr.mxu0 0.0
        %813 = vmatpush1.msra.mxu0 0.0
        %814 = vmatprep.subr.mxu0 0.0
        %815 = vmatpush1.msra.mxu0 0.0
        %816 = vmatprep.subr.mxu0 0.0
        %817 = vmatpush1.msra.mxu0 0.0
        %818 = vmatprep.subr.mxu0 0.0
        %819 = vmatpush1.msra.mxu0 0.0
        %820 = vmatprep.subr.mxu0 0.0
        %821 = vmatpush1.msra.mxu0 0.0
        %822 = vmatprep.subr.mxu0 0.0
        %823 = vmatpush1.msra.mxu0 0.0
        %824 = vmatprep.subr.mxu0 0.0
        %825 = vmatpush1.msra.mxu0 0.0
        %826 = vmatprep.subr.mxu0 0.0
        %827 = vmatpush1.msra.mxu0 0.0
        %828 = vmatprep.subr.mxu0 0.0
        %829 = vmatpush1.msra.mxu0 0.0
        %830 = vmatprep.subr.mxu0 0.0
        %831 = vmatpush1.msra.mxu0 0.0
        %832 = vmatprep.subr.mxu0 0.0
        %833 = vmatpush1.msra.mxu0 0.0
        %834 = vmatprep.mubr.f32.mxu0 0.0
        %v835 = vand.u32 %v193, 4294901760
        %836 = vmatmul.mubr.f32.gmra.mrb[0].mxu0 %v835
        %v837 = vpop.f32.mrb[0].mxu0
        %v838 = vadd.f32 %v750, %v837
        %v839 = vpop.f32.mrb[0].mxu0
        %v840 = vadd.f32 %v752, %v839
        %841 = vdwg.mxu0
        %842 = vst [vmem:[%s173] sm:$0xff] %v838
        %843 = vst [vmem:[%s173 + $0x8] sm:$0xff] %v840
        %s844 = sand.u32 %s75, 1
        %s845 = scalar_lea.sflag [#allocation4], %s844
        %s846 = sand.u32 %s75, 1
        %s847 = smul.addr %s846, 16
        %s848 = scalar_lea.vmem [#allocation7], %s847
        // Predicated region
        $region37: #{tpu_custom_call.1} parent=27 // pred_check
          %p849 = pneg %p85
        $region38: #{tpu_custom_call.1} parent=27 // pred_check_branch
          %851 = sbr.rel (%p849) target = $region40
        $region39: #{tpu_custom_call.1} parent=27 // pred_region
          %s853 = ssub.s32 256, 256
          %854 = vsyncadd %s845, %s853
          %s855 = smul.addr %s20, 2
          %s856 = smul.addr %s855, 128
          %s857 = scalar_lea.hbm %s2, %s856
          %s859 = sshll.u32 %s848, 4
          %s860 = int_to_ptr.vmem [resolvable:$true] %s859
          %862 = dma.vmem_to_hbm [thread:$0]  %s860, 256, %s857, %s845
        $region40: #{tpu_custom_call.1} parent=27 // pred_fallthru
          _
      $region28: #{tpu_custom_call.1} parent=5 // pred_fallthru
        _
      %p863 = scmp.le.s32.totalorder 2, %s15
      // Predicated region
      $region41: #{tpu_custom_call.1} parent=5 // pred_check
        %p864 = pneg %p863
      $region42: #{tpu_custom_call.1} parent=5 // pred_check_branch
        %866 = sbr.rel (%p864) target = $region44
      $region43: #{tpu_custom_call.1} parent=5 // pred_region
        %s867 = ssub.s32 %s15, 2
        // Predicated region
        $region45: #{tpu_custom_call.1} parent=43 // pred_check
          %p868 = pneg %p91
        $region46: #{tpu_custom_call.1} parent=43 // pred_check_branch
          %870 = sbr.rel (%p868) target = $region48
        $region47: #{tpu_custom_call.1} parent=43 // pred_region
          %s871 = sand.u32 %s76, 1
          %s872 = scalar_lea.sflag [#allocation4], %s871
          %s873 = sand.u32 %s76, 1
          %s874 = smul.addr %s873, 16
          %s875 = scalar_lea.vmem [#allocation7], %s874
          %876 = dma.done %s872, 256
        $region48: #{tpu_custom_call.1} parent=43 // pred_fallthru
          _
      $region44: #{tpu_custom_call.1} parent=5 // pred_fallthru
        _
    $region6: #{tpu_custom_call.1} parent=1 // loop_footer
      %s19 = sadd.s32 1, %s15
    $region7: #{tpu_custom_call.1} parent=1 // loop_footer_branch
      %14 = sbr.rel target = $region3
    $region8: #{tpu_custom_call.1} parent=1 // loop_exit
      _
    %877 = vsyncpa [#allocation3], 1
    %s878 = scalar_lea.sflag [#allocation3], 1
    %879 = vsyncpa %s878, 1
    %880 = vsyncpa [#allocation6], 1
    %s881 = scalar_lea.sflag [#allocation6], 1
    %882 = vsyncpa %s881, 1
    %883 = vsyncpa [#allocation4], 1
    %s884 = scalar_lea.sflag [#allocation4], 1
    %885 = vsyncpa %s884, 1

</llo_original>
